<compile_context>
chip_gen: v7x
topology: tpu7x:2x2x1
jax: 0.10.0
libtpu: 0.0.40
codegen_flags: <defaults>
</compile_context>

<pallas_src>
import jax
import jax.numpy as jnp
from jax.experimental import pallas as pl
from jax.experimental.pallas import tpu as pltpu


# ---------------------------------------------------------------------------
# Fused Pallas kernel: GCN x2 -> pair gather -> MLP readout
# ---------------------------------------------------------------------------
def fused_forward_kernel(
    key_ref,                                   # SMEM [B, 2] int32
    a_ref, x_ref,                              # VMEM [N, N], [N, F]
    wg1_ref, bg1_ref, wg2_ref, bg2_ref,        # GCN weights
    wm1u_ref, wm1i_ref, bm1_ref,               # readout layer-1 (split W1)
    wm2_ref, bm2_ref,                          # readout layer-2 (row form)
    o_ref,                                     # VMEM [1, B] output (lane-dense)
    h2_ref, eu_ref, ei_ref,                    # VMEM scratch
):
    a = a_ref[...]

    # GCN layer 1: h1 = relu(A @ (X @ Wg1) + bg1)
    xw = jnp.dot(x_ref[...], wg1_ref[...], preferred_element_type=jnp.float32)
    h1 = jnp.maximum(
        jnp.dot(a, xw, preferred_element_type=jnp.float32) + bg1_ref[...], 0.0)

    # GCN layer 2: h2 = relu(A @ (h1 @ Wg2) + bg2)  -> kept in VMEM scratch
    hw = jnp.dot(h1, wg2_ref[...], preferred_element_type=jnp.float32)
    h2_ref[...] = jnp.maximum(
        jnp.dot(a, hw, preferred_element_type=jnp.float32) + bg2_ref[...], 0.0)

    # Gather (user, item) rows of h2 into (B, H) scratches (dynamic-row reads).
    bsz = key_ref.shape[0]
    for bi in range(bsz):                      # B is small & static -> unrolled
        u = key_ref[bi, 0]
        it = key_ref[bi, 1]
        eu_ref[pl.ds(bi, 1), :] = h2_ref[pl.ds(u, 1), :]
        ei_ref[pl.ds(bi, 1), :] = h2_ref[pl.ds(it, 1), :]

    # Readout layer 1 with the concat folded into a split-W1 accumulate:
    #   h = relu(e_u @ W1[:H] + e_i @ W1[H:] + b1)
    hm = jnp.dot(eu_ref[...], wm1u_ref[...], preferred_element_type=jnp.float32)
    hm = hm + jnp.dot(ei_ref[...], wm1i_ref[...], preferred_element_type=jnp.float32)
    hm = jnp.maximum(hm + bm1_ref[...], 0.0)

    # Readout layer 2 as a VPU lane-reduction (instead of an (H,1) MXU matmul),
    # stored lane-dense as (1, B).
    scores = jnp.sum(hm * wm2_ref[...], axis=-1)          # (B,)
    o_ref[...] = scores.reshape(1, bsz) + bm2_ref[...]    # (1, B)


# ---------------------------------------------------------------------------
# Wrapper
# ---------------------------------------------------------------------------
_VMEM = pl.BlockSpec(memory_space=pltpu.MemorySpace.VMEM)
_SMEM = pl.BlockSpec(memory_space=pltpu.MemorySpace.SMEM)


def model_forward(params, adjacency, features, key_idx):
    """Equivalent of Model.forward(adjacency, features, key) -> y.flatten()."""
    n, f = features.shape
    h = params["w_g1"].shape[1]
    b = key_idx.shape[0]

    flops = (2 * n * f * h + 2 * n * n * h          # GCN layer 1
             + 2 * n * h * h + 2 * n * n * h        # GCN layer 2
             + 4 * b * h * h + 2 * b * h)           # readout
    operands = (key_idx, adjacency, features,
                params["w_g1"], params["b_g1"], params["w_g2"], params["b_g2"],
                params["w_m1_u"], params["w_m1_i"], params["b_m1"],
                params["w_m2_row"], params["b_m2"])
    bytes_accessed = sum(int(x.size) * x.dtype.itemsize for x in operands) + 4 * b

    y = pl.pallas_call(
        fused_forward_kernel,
        out_shape=jax.ShapeDtypeStruct((1, b), jnp.float32),
        in_specs=[_SMEM] + [_VMEM] * 11,
        out_specs=_VMEM,
        scratch_shapes=[
            pltpu.VMEM((n, h), jnp.float32),   # h2
            pltpu.VMEM((b, h), jnp.float32),   # e_u
            pltpu.VMEM((b, h), jnp.float32),   # e_i
        ],
        cost_estimate=pl.CostEstimate(
            flops=flops, transcendentals=0, bytes_accessed=bytes_accessed),
    )(*operands)
    return y.reshape(-1)  # y.flatten()


def model_forward_ref(params, adjacency, features, key_idx):
    """Pure-JAX reference (same math, no Pallas) for correctness checking."""
    dot = lambda a, b: jnp.dot(a, b, preferred_element_type=jnp.float32)
    h1 = jnp.maximum(dot(adjacency, dot(features, params["w_g1"])) + params["b_g1"], 0.0)
    h2 = jnp.maximum(dot(adjacency, dot(h1, params["w_g2"])) + params["b_g2"], 0.0)
    e_u = h2[key_idx[:, 0]]
    e_i = h2[key_idx[:, 1]]
    hm = jnp.maximum(dot(e_u, params["w_m1_u"]) + dot(e_i, params["w_m1_i"])
                     + params["b_m1"], 0.0)
    return jnp.sum(hm * params["w_m2_row"], axis=-1) + params["b_m2"][0, 0]


# ---------------------------------------------------------------------------
# Deterministic parameter init (input_size = F, hidden_size = args.rank).
# W1 of the readout is generated as (2H, H) and split so the in-kernel
# split-W1 accumulate is mathematically identical to concat([e_u,e_i]) @ W1.
# ---------------------------------------------------------------------------
def init_params(rng, input_size, hidden_size):
    ks = jax.random.split(rng, 4)
    s = 0.1
    w_m1 = s * jax.random.normal(ks[2], (2 * hidden_size, hidden_size), jnp.float32)
    w_m2 = s * jax.random.normal(ks[3], (hidden_size, 1), jnp.float32)
    return {
        "w_g1": s * jax.random.normal(ks[0], (input_size, hidden_size), jnp.float32),
        "b_g1": jnp.zeros((1, hidden_size), jnp.float32),
        "w_g2": s * jax.random.normal(ks[1], (hidden_size, hidden_size), jnp.float32),
        "b_g2": jnp.zeros((1, hidden_size), jnp.float32),
        "w_m1_u": w_m1[:hidden_size],            # W1[:H, :]
        "w_m1_i": w_m1[hidden_size:],            # W1[H:, :]
        "b_m1": jnp.zeros((1, hidden_size), jnp.float32),
        "w_m2_row": w_m2.T,                      # (1, H) row form of (H, 1)
        "b_m2": jnp.zeros((1, 1), jnp.float32),
    }


# ---------------------------------------------------------------------------
if __name__ == "__main__":
    N = 16          # number of graph nodes
    F = 8           # data.x.shape[-1]  (input_size)
    RANK = 32       # args.rank         (hidden_size)
    B = 8           # number of (user, item) keys in the batch

    root = jax.random.PRNGKey(0)
    k_adj, k_feat, k_key, k_params = jax.random.split(root, 4)

    # Random symmetric adjacency with self loops, row-normalized.
    a = (jax.random.uniform(k_adj, (N, N)) < 0.3).astype(jnp.float32)
    a = jnp.maximum(a, a.T) + jnp.eye(N, dtype=jnp.float32)
    adjacency = a / jnp.sum(a, axis=-1, keepdims=True)

    features = jax.random.normal(k_feat, (N, F), jnp.float32)
    key_idx = jax.random.randint(k_key, (B, 2), 0, N, dtype=jnp.int32)

    params = init_params(k_params, F, RANK)

    y = jax.jit(model_forward)(params, adjacency, features, key_idx)
    jax.block_until_ready(y)
    assert y.shape == (B,)

    y_ref = model_forward_ref(params, adjacency, features, key_idx)
    assert jnp.allclose(y, y_ref, atol=1e-3, rtol=1e-2), (y, y_ref)

    print("KERNEL_OK")
</pallas_src>

<mosaic_0001>
module attributes {stable_mosaic.version = 11 : i64} {
  func.func @fused_forward_kernel(%arg0: memref<8x2xi32, #tpu.memory_space<smem>>, %arg1: memref<16x16xf32, #tpu.memory_space<vmem>>, %arg2: memref<16x8xf32, #tpu.memory_space<vmem>>, %arg3: memref<8x32xf32, #tpu.memory_space<vmem>>, %arg4: memref<1x32xf32, #tpu.memory_space<vmem>>, %arg5: memref<32x32xf32, #tpu.memory_space<vmem>>, %arg6: memref<1x32xf32, #tpu.memory_space<vmem>>, %arg7: memref<32x32xf32, #tpu.memory_space<vmem>>, %arg8: memref<32x32xf32, #tpu.memory_space<vmem>>, %arg9: memref<1x32xf32, #tpu.memory_space<vmem>>, %arg10: memref<1x32xf32, #tpu.memory_space<vmem>>, %arg11: memref<1x1xf32, #tpu.memory_space<vmem>>, %arg12: memref<1x8xf32, #tpu.memory_space<vmem>>, %arg13: memref<16x32xf32, #tpu.memory_space<vmem>>, %arg14: memref<8x32xf32, #tpu.memory_space<vmem>>, %arg15: memref<8x32xf32, #tpu.memory_space<vmem>>) attributes {dimension_semantics = [], scalar_prefetch = 0 : i64, scratch_operands = 3 : i64, tpu.core_type = #tpu.core_type<tc>} {
    %c0 = arith.constant 0 : index
    %c0_0 = arith.constant 0 : index
    %0 = vector.load %arg1[%c0, %c0_0] : memref<16x16xf32, #tpu.memory_space<vmem>>, vector<16x16xf32>
    %c0_1 = arith.constant 0 : index
    %c0_2 = arith.constant 0 : index
    %1 = vector.load %arg2[%c0_1, %c0_2] : memref<16x8xf32, #tpu.memory_space<vmem>>, vector<16x8xf32>
    %c0_3 = arith.constant 0 : index
    %c0_4 = arith.constant 0 : index
    %2 = vector.load %arg3[%c0_3, %c0_4] : memref<8x32xf32, #tpu.memory_space<vmem>>, vector<8x32xf32>
    %cst = arith.constant dense<0.000000e+00> : vector<16x32xf32>
    %3 = tpu.matmul %1, %2, %cst {dimension_numbers = #tpu.dot_dimension_numbers<[1], [0], [0], [1], [0, 0, 1, 1], [], []>} : vector<16x8xf32>, vector<8x32xf32>, vector<16x32xf32> -> vector<16x32xf32>
    %cst_5 = arith.constant dense<0.000000e+00> : vector<16x32xf32>
    %4 = tpu.matmul %0, %3, %cst_5 {dimension_numbers = #tpu.dot_dimension_numbers<[1], [0], [0], [1], [0, 0, 1, 1], [], []>} : vector<16x16xf32>, vector<16x32xf32>, vector<16x32xf32> -> vector<16x32xf32>
    %c0_6 = arith.constant 0 : index
    %c0_7 = arith.constant 0 : index
    %5 = vector.load %arg4[%c0_6, %c0_7] : memref<1x32xf32, #tpu.memory_space<vmem>>, vector<1x32xf32>
    %6 = vector.broadcast %5 : vector<1x32xf32> to vector<16x32xf32>
    %7 = arith.addf %4, %6 : vector<16x32xf32>
    %cst_8 = arith.constant 0.000000e+00 : f32
    %8 = vector.broadcast %cst_8 : f32 to vector<16x32xf32>
    %9 = arith.maximumf %7, %8 : vector<16x32xf32>
    %c0_9 = arith.constant 0 : index
    %c0_10 = arith.constant 0 : index
    %10 = vector.load %arg5[%c0_9, %c0_10] : memref<32x32xf32, #tpu.memory_space<vmem>>, vector<32x32xf32>
    %cst_11 = arith.constant dense<0.000000e+00> : vector<16x32xf32>
    %11 = tpu.matmul %9, %10, %cst_11 {dimension_numbers = #tpu.dot_dimension_numbers<[1], [0], [0], [1], [0, 0, 1, 1], [], []>} : vector<16x32xf32>, vector<32x32xf32>, vector<16x32xf32> -> vector<16x32xf32>
    %cst_12 = arith.constant dense<0.000000e+00> : vector<16x32xf32>
    %12 = tpu.matmul %0, %11, %cst_12 {dimension_numbers = #tpu.dot_dimension_numbers<[1], [0], [0], [1], [0, 0, 1, 1], [], []>} : vector<16x16xf32>, vector<16x32xf32>, vector<16x32xf32> -> vector<16x32xf32>
    %c0_13 = arith.constant 0 : index
    %c0_14 = arith.constant 0 : index
    %13 = vector.load %arg6[%c0_13, %c0_14] : memref<1x32xf32, #tpu.memory_space<vmem>>, vector<1x32xf32>
    %14 = vector.broadcast %13 : vector<1x32xf32> to vector<16x32xf32>
    %15 = arith.addf %12, %14 : vector<16x32xf32>
    %cst_15 = arith.constant 0.000000e+00 : f32
    %16 = vector.broadcast %cst_15 : f32 to vector<16x32xf32>
    %17 = arith.maximumf %15, %16 : vector<16x32xf32>
    %c0_16 = arith.constant 0 : index
    %c0_17 = arith.constant 0 : index
    %18 = vector.load %arg13[%c0_16, %c0_17] : memref<16x32xf32, #tpu.memory_space<vmem>>, vector<16x32xf32>
    tpu.vector_store %arg13[%c0_16, %c0_17], %17 {strides = array<i32>} : memref<16x32xf32, #tpu.memory_space<vmem>>, vector<16x32xf32>,
    %c0_18 = arith.constant 0 : index
    %c0_19 = arith.constant 0 : index
    %19 = memref.load %arg0[%c0_18, %c0_19] : memref<8x2xi32, #tpu.memory_space<smem>>
    %c0_20 = arith.constant 0 : index
    %c1 = arith.constant 1 : index
    %20 = memref.load %arg0[%c0_20, %c1] : memref<8x2xi32, #tpu.memory_space<smem>>
    %21 = arith.index_cast %19 : i32 to index
    %c0_21 = arith.constant 0 : index
    %22 = vector.load %arg13[%21, %c0_21] : memref<16x32xf32, #tpu.memory_space<vmem>>, vector<1x32xf32>
    %c0_22 = arith.constant 0 : index
    %c0_23 = arith.constant 0 : index
    %23 = vector.load %arg14[%c0_22, %c0_23] : memref<8x32xf32, #tpu.memory_space<vmem>>, vector<1x32xf32>
    tpu.vector_store %arg14[%c0_22, %c0_23], %22 {strides = array<i32>} : memref<8x32xf32, #tpu.memory_space<vmem>>, vector<1x32xf32>,
    %24 = arith.index_cast %20 : i32 to index
    %c0_24 = arith.constant 0 : index
    %25 = vector.load %arg13[%24, %c0_24] : memref<16x32xf32, #tpu.memory_space<vmem>>, vector<1x32xf32>
    %c0_25 = arith.constant 0 : index
    %c0_26 = arith.constant 0 : index
    %26 = vector.load %arg15[%c0_25, %c0_26] : memref<8x32xf32, #tpu.memory_space<vmem>>, vector<1x32xf32>
    tpu.vector_store %arg15[%c0_25, %c0_26], %25 {strides = array<i32>} : memref<8x32xf32, #tpu.memory_space<vmem>>, vector<1x32xf32>,
    %c1_27 = arith.constant 1 : index
    %c0_28 = arith.constant 0 : index
    %27 = memref.load %arg0[%c1_27, %c0_28] : memref<8x2xi32, #tpu.memory_space<smem>>
    %c1_29 = arith.constant 1 : index
    %c1_30 = arith.constant 1 : index
    %28 = memref.load %arg0[%c1_29, %c1_30] : memref<8x2xi32, #tpu.memory_space<smem>>
    %29 = arith.index_cast %27 : i32 to index
    %c0_31 = arith.constant 0 : index
    %30 = vector.load %arg13[%29, %c0_31] : memref<16x32xf32, #tpu.memory_space<vmem>>, vector<1x32xf32>
    %c1_32 = arith.constant 1 : index
    %c0_33 = arith.constant 0 : index
    %31 = vector.load %arg14[%c1_32, %c0_33] : memref<8x32xf32, #tpu.memory_space<vmem>>, vector<1x32xf32>
    tpu.vector_store %arg14[%c1_32, %c0_33], %30 {strides = array<i32>} : memref<8x32xf32, #tpu.memory_space<vmem>>, vector<1x32xf32>,
    %32 = arith.index_cast %28 : i32 to index
    %c0_34 = arith.constant 0 : index
    %33 = vector.load %arg13[%32, %c0_34] : memref<16x32xf32, #tpu.memory_space<vmem>>, vector<1x32xf32>
    %c1_35 = arith.constant 1 : index
    %c0_36 = arith.constant 0 : index
    %34 = vector.load %arg15[%c1_35, %c0_36] : memref<8x32xf32, #tpu.memory_space<vmem>>, vector<1x32xf32>
    tpu.vector_store %arg15[%c1_35, %c0_36], %33 {strides = array<i32>} : memref<8x32xf32, #tpu.memory_space<vmem>>, vector<1x32xf32>,
    %c2 = arith.constant 2 : index
    %c0_37 = arith.constant 0 : index
    %35 = memref.load %arg0[%c2, %c0_37] : memref<8x2xi32, #tpu.memory_space<smem>>
    %c2_38 = arith.constant 2 : index
    %c1_39 = arith.constant 1 : index
    %36 = memref.load %arg0[%c2_38, %c1_39] : memref<8x2xi32, #tpu.memory_space<smem>>
    %37 = arith.index_cast %35 : i32 to index
    %c0_40 = arith.constant 0 : index
    %38 = vector.load %arg13[%37, %c0_40] : memref<16x32xf32, #tpu.memory_space<vmem>>, vector<1x32xf32>
    %c2_41 = arith.constant 2 : index
    %c0_42 = arith.constant 0 : index
    %39 = vector.load %arg14[%c2_41, %c0_42] : memref<8x32xf32, #tpu.memory_space<vmem>>, vector<1x32xf32>
    tpu.vector_store %arg14[%c2_41, %c0_42], %38 {strides = array<i32>} : memref<8x32xf32, #tpu.memory_space<vmem>>, vector<1x32xf32>,
    %40 = arith.index_cast %36 : i32 to index
    %c0_43 = arith.constant 0 : index
    %41 = vector.load %arg13[%40, %c0_43] : memref<16x32xf32, #tpu.memory_space<vmem>>, vector<1x32xf32>
    %c2_44 = arith.constant 2 : index
    %c0_45 = arith.constant 0 : index
    %42 = vector.load %arg15[%c2_44, %c0_45] : memref<8x32xf32, #tpu.memory_space<vmem>>, vector<1x32xf32>
    tpu.vector_store %arg15[%c2_44, %c0_45], %41 {strides = array<i32>} : memref<8x32xf32, #tpu.memory_space<vmem>>, vector<1x32xf32>,
    %c3 = arith.constant 3 : index
    %c0_46 = arith.constant 0 : index
    %43 = memref.load %arg0[%c3, %c0_46] : memref<8x2xi32, #tpu.memory_space<smem>>
    %c3_47 = arith.constant 3 : index
    %c1_48 = arith.constant 1 : index
    %44 = memref.load %arg0[%c3_47, %c1_48] : memref<8x2xi32, #tpu.memory_space<smem>>
    %45 = arith.index_cast %43 : i32 to index
    %c0_49 = arith.constant 0 : index
    %46 = vector.load %arg13[%45, %c0_49] : memref<16x32xf32, #tpu.memory_space<vmem>>, vector<1x32xf32>
    %c3_50 = arith.constant 3 : index
    %c0_51 = arith.constant 0 : index
    %47 = vector.load %arg14[%c3_50, %c0_51] : memref<8x32xf32, #tpu.memory_space<vmem>>, vector<1x32xf32>
    tpu.vector_store %arg14[%c3_50, %c0_51], %46 {strides = array<i32>} : memref<8x32xf32, #tpu.memory_space<vmem>>, vector<1x32xf32>,
    %48 = arith.index_cast %44 : i32 to index
    %c0_52 = arith.constant 0 : index
    %49 = vector.load %arg13[%48, %c0_52] : memref<16x32xf32, #tpu.memory_space<vmem>>, vector<1x32xf32>
    %c3_53 = arith.constant 3 : index
    %c0_54 = arith.constant 0 : index
    %50 = vector.load %arg15[%c3_53, %c0_54] : memref<8x32xf32, #tpu.memory_space<vmem>>, vector<1x32xf32>
    tpu.vector_store %arg15[%c3_53, %c0_54], %49 {strides = array<i32>} : memref<8x32xf32, #tpu.memory_space<vmem>>, vector<1x32xf32>,
    %c4 = arith.constant 4 : index
    %c0_55 = arith.constant 0 : index
    %51 = memref.load %arg0[%c4, %c0_55] : memref<8x2xi32, #tpu.memory_space<smem>>
    %c4_56 = arith.constant 4 : index
    %c1_57 = arith.constant 1 : index
    %52 = memref.load %arg0[%c4_56, %c1_57] : memref<8x2xi32, #tpu.memory_space<smem>>
    %53 = arith.index_cast %51 : i32 to index
    %c0_58 = arith.constant 0 : index
    %54 = vector.load %arg13[%53, %c0_58] : memref<16x32xf32, #tpu.memory_space<vmem>>, vector<1x32xf32>
    %c4_59 = arith.constant 4 : index
    %c0_60 = arith.constant 0 : index
    %55 = vector.load %arg14[%c4_59, %c0_60] : memref<8x32xf32, #tpu.memory_space<vmem>>, vector<1x32xf32>
    tpu.vector_store %arg14[%c4_59, %c0_60], %54 {strides = array<i32>} : memref<8x32xf32, #tpu.memory_space<vmem>>, vector<1x32xf32>,
    %56 = arith.index_cast %52 : i32 to index
    %c0_61 = arith.constant 0 : index
    %57 = vector.load %arg13[%56, %c0_61] : memref<16x32xf32, #tpu.memory_space<vmem>>, vector<1x32xf32>
    %c4_62 = arith.constant 4 : index
    %c0_63 = arith.constant 0 : index
    %58 = vector.load %arg15[%c4_62, %c0_63] : memref<8x32xf32, #tpu.memory_space<vmem>>, vector<1x32xf32>
    tpu.vector_store %arg15[%c4_62, %c0_63], %57 {strides = array<i32>} : memref<8x32xf32, #tpu.memory_space<vmem>>, vector<1x32xf32>,
    %c5 = arith.constant 5 : index
    %c0_64 = arith.constant 0 : index
    %59 = memref.load %arg0[%c5, %c0_64] : memref<8x2xi32, #tpu.memory_space<smem>>
    %c5_65 = arith.constant 5 : index
    %c1_66 = arith.constant 1 : index
    %60 = memref.load %arg0[%c5_65, %c1_66] : memref<8x2xi32, #tpu.memory_space<smem>>
    %61 = arith.index_cast %59 : i32 to index
    %c0_67 = arith.constant 0 : index
    %62 = vector.load %arg13[%61, %c0_67] : memref<16x32xf32, #tpu.memory_space<vmem>>, vector<1x32xf32>
    %c5_68 = arith.constant 5 : index
    %c0_69 = arith.constant 0 : index
    %63 = vector.load %arg14[%c5_68, %c0_69] : memref<8x32xf32, #tpu.memory_space<vmem>>, vector<1x32xf32>
    tpu.vector_store %arg14[%c5_68, %c0_69], %62 {strides = array<i32>} : memref<8x32xf32, #tpu.memory_space<vmem>>, vector<1x32xf32>,
    %64 = arith.index_cast %60 : i32 to index
    %c0_70 = arith.constant 0 : index
    %65 = vector.load %arg13[%64, %c0_70] : memref<16x32xf32, #tpu.memory_space<vmem>>, vector<1x32xf32>
    %c5_71 = arith.constant 5 : index
    %c0_72 = arith.constant 0 : index
    %66 = vector.load %arg15[%c5_71, %c0_72] : memref<8x32xf32, #tpu.memory_space<vmem>>, vector<1x32xf32>
    tpu.vector_store %arg15[%c5_71, %c0_72], %65 {strides = array<i32>} : memref<8x32xf32, #tpu.memory_space<vmem>>, vector<1x32xf32>,
    %c6 = arith.constant 6 : index
    %c0_73 = arith.constant 0 : index
    %67 = memref.load %arg0[%c6, %c0_73] : memref<8x2xi32, #tpu.memory_space<smem>>
    %c6_74 = arith.constant 6 : index
    %c1_75 = arith.constant 1 : index
    %68 = memref.load %arg0[%c6_74, %c1_75] : memref<8x2xi32, #tpu.memory_space<smem>>
    %69 = arith.index_cast %67 : i32 to index
    %c0_76 = arith.constant 0 : index
    %70 = vector.load %arg13[%69, %c0_76] : memref<16x32xf32, #tpu.memory_space<vmem>>, vector<1x32xf32>
    %c6_77 = arith.constant 6 : index
    %c0_78 = arith.constant 0 : index
    %71 = vector.load %arg14[%c6_77, %c0_78] : memref<8x32xf32, #tpu.memory_space<vmem>>, vector<1x32xf32>
    tpu.vector_store %arg14[%c6_77, %c0_78], %70 {strides = array<i32>} : memref<8x32xf32, #tpu.memory_space<vmem>>, vector<1x32xf32>,
    %72 = arith.index_cast %68 : i32 to index
    %c0_79 = arith.constant 0 : index
    %73 = vector.load %arg13[%72, %c0_79] : memref<16x32xf32, #tpu.memory_space<vmem>>, vector<1x32xf32>
    %c6_80 = arith.constant 6 : index
    %c0_81 = arith.constant 0 : index
    %74 = vector.load %arg15[%c6_80, %c0_81] : memref<8x32xf32, #tpu.memory_space<vmem>>, vector<1x32xf32>
    tpu.vector_store %arg15[%c6_80, %c0_81], %73 {strides = array<i32>} : memref<8x32xf32, #tpu.memory_space<vmem>>, vector<1x32xf32>,
    %c7 = arith.constant 7 : index
    %c0_82 = arith.constant 0 : index
    %75 = memref.load %arg0[%c7, %c0_82] : memref<8x2xi32, #tpu.memory_space<smem>>
    %c7_83 = arith.constant 7 : index
    %c1_84 = arith.constant 1 : index
    %76 = memref.load %arg0[%c7_83, %c1_84] : memref<8x2xi32, #tpu.memory_space<smem>>
    %77 = arith.index_cast %75 : i32 to index
    %c0_85 = arith.constant 0 : index
    %78 = vector.load %arg13[%77, %c0_85] : memref<16x32xf32, #tpu.memory_space<vmem>>, vector<1x32xf32>
    %c7_86 = arith.constant 7 : index
    %c0_87 = arith.constant 0 : index
    %79 = vector.load %arg14[%c7_86, %c0_87] : memref<8x32xf32, #tpu.memory_space<vmem>>, vector<1x32xf32>
    tpu.vector_store %arg14[%c7_86, %c0_87], %78 {strides = array<i32>} : memref<8x32xf32, #tpu.memory_space<vmem>>, vector<1x32xf32>,
    %80 = arith.index_cast %76 : i32 to index
    %c0_88 = arith.constant 0 : index
    %81 = vector.load %arg13[%80, %c0_88] : memref<16x32xf32, #tpu.memory_space<vmem>>, vector<1x32xf32>
    %c7_89 = arith.constant 7 : index
    %c0_90 = arith.constant 0 : index
    %82 = vector.load %arg15[%c7_89, %c0_90] : memref<8x32xf32, #tpu.memory_space<vmem>>, vector<1x32xf32>
    tpu.vector_store %arg15[%c7_89, %c0_90], %81 {strides = array<i32>} : memref<8x32xf32, #tpu.memory_space<vmem>>, vector<1x32xf32>,
    %c0_91 = arith.constant 0 : index
    %c0_92 = arith.constant 0 : index
    %83 = vector.load %arg14[%c0_91, %c0_92] : memref<8x32xf32, #tpu.memory_space<vmem>>, vector<8x32xf32>
    %c0_93 = arith.constant 0 : index
    %c0_94 = arith.constant 0 : index
    %84 = vector.load %arg7[%c0_93, %c0_94] : memref<32x32xf32, #tpu.memory_space<vmem>>, vector<32x32xf32>
    %cst_95 = arith.constant dense<0.000000e+00> : vector<8x32xf32>
    %85 = tpu.matmul %83, %84, %cst_95 {dimension_numbers = #tpu.dot_dimension_numbers<[1], [0], [0], [1], [0, 0, 1, 1], [], []>} : vector<8x32xf32>, vector<32x32xf32>, vector<8x32xf32> -> vector<8x32xf32>
    %c0_96 = arith.constant 0 : index
    %c0_97 = arith.constant 0 : index
    %86 = vector.load %arg15[%c0_96, %c0_97] : memref<8x32xf32, #tpu.memory_space<vmem>>, vector<8x32xf32>
    %c0_98 = arith.constant 0 : index
    %c0_99 = arith.constant 0 : index
    %87 = vector.load %arg8[%c0_98, %c0_99] : memref<32x32xf32, #tpu.memory_space<vmem>>, vector<32x32xf32>
    %cst_100 = arith.constant dense<0.000000e+00> : vector<8x32xf32>
    %88 = tpu.matmul %86, %87, %cst_100 {dimension_numbers = #tpu.dot_dimension_numbers<[1], [0], [0], [1], [0, 0, 1, 1], [], []>} : vector<8x32xf32>, vector<32x32xf32>, vector<8x32xf32> -> vector<8x32xf32>
    %89 = arith.addf %85, %88 : vector<8x32xf32>
    %c0_101 = arith.constant 0 : index
    %c0_102 = arith.constant 0 : index
    %90 = vector.load %arg9[%c0_101, %c0_102] : memref<1x32xf32, #tpu.memory_space<vmem>>, vector<1x32xf32>
    %91 = vector.broadcast %90 : vector<1x32xf32> to vector<8x32xf32>
    %92 = arith.addf %89, %91 : vector<8x32xf32>
    %cst_103 = arith.constant 0.000000e+00 : f32
    %93 = vector.broadcast %cst_103 : f32 to vector<8x32xf32>
    %94 = arith.maximumf %92, %93 : vector<8x32xf32>
    %c0_104 = arith.constant 0 : index
    %c0_105 = arith.constant 0 : index
    %95 = vector.load %arg10[%c0_104, %c0_105] : memref<1x32xf32, #tpu.memory_space<vmem>>, vector<1x32xf32>
    %96 = vector.broadcast %95 : vector<1x32xf32> to vector<8x32xf32>
    %97 = arith.mulf %94, %96 : vector<8x32xf32>
    %cst_106 = arith.constant dense<0.000000e+00> : vector<8xf32>
    %98 = vector.multi_reduction <add>, %97, %cst_106 [1] : vector<8x32xf32> to vector<8xf32>
    %99 = vector.shape_cast %98 : vector<8xf32> to vector<1x8xf32>
    %c0_107 = arith.constant 0 : index
    %c0_108 = arith.constant 0 : index
    %100 = vector.load %arg11[%c0_107, %c0_108] : memref<1x1xf32, #tpu.memory_space<vmem>>, vector<1x1xf32>
    %101 = vector.broadcast %100 : vector<1x1xf32> to vector<1x8xf32>
    %102 = arith.addf %99, %101 : vector<1x8xf32>
    %c0_109 = arith.constant 0 : index
    %c0_110 = arith.constant 0 : index
    %103 = vector.load %arg12[%c0_109, %c0_110] : memref<1x8xf32, #tpu.memory_space<vmem>>, vector<1x8xf32>
    tpu.vector_store %arg12[%c0_109, %c0_110], %102 {strides = array<i32>} : memref<1x8xf32, #tpu.memory_space<vmem>>, vector<1x8xf32>,
    return
  }
}

</mosaic_0001>

<llo_original>
// kernel: model_forward.1
$region0: #{model_forward.1}
  #allocation0 [shape = 'u32[]', space=smem, size = 0x4, offset = 0x4, fixed_abs, tag = 'smem constant byte address 0x4 - core index']
  #allocation1 [shape = 'u32[144,128]{1,0:T(1,128)}', space=vmem, size = 0x12000, scoped, tag = 'internal scratch']
  #allocation2 [shape = 'f32[16,32]{1,0:T(8,128)}', space=vmem, size = 0x2000, scoped, tag = 'scratch operand']
  #allocation3 [shape = 'f32[8,32]{1,0:T(8,128)}', space=vmem, size = 0x1000, scoped, tag = 'scratch operand']
  #allocation4 [shape = 'f32[8,32]{1,0:T(8,128)}', space=vmem, size = 0x1000, scoped, tag = 'scratch operand']
  #allocation5 [shape = 'f32[1,1]{1,0:T(1,128)S(1)}', space=vmem, size = 0x200, scoped, tag = 'scoped memory for model_forward.1']
  %s0 = inlined_call_operand.vmem [shape: s32[8,2], index: 0, kind: input, shape index: {}]
  %s1 = inlined_call_operand.vmem [shape: f32[16,16], index: 1, kind: input, shape index: {}]
  %s2 = inlined_call_operand.vmem [shape: f32[16,8], index: 2, kind: input, shape index: {}]
  %s3 = inlined_call_operand.hbm [shape: f32[8,32], index: 3, kind: input, shape index: {}]
  %s4 = inlined_call_operand.hbm [shape: f32[1,32], index: 4, kind: input, shape index: {}]
  %s5 = inlined_call_operand.vmem [shape: f32[32,32], index: 5, kind: input, shape index: {}]
  %s6 = inlined_call_operand.hbm [shape: f32[1,32], index: 6, kind: input, shape index: {}]
  %s7 = inlined_call_operand.hbm [shape: f32[32,32], index: 7, kind: input, shape index: {}]
  %s8 = inlined_call_operand.hbm [shape: f32[32,32], index: 8, kind: input, shape index: {}]
  %s9 = inlined_call_operand.hbm [shape: f32[1,32], index: 9, kind: input, shape index: {}]
  %s10 = inlined_call_operand.vmem [shape: f32[1,32], index: 10, kind: input, shape index: {}]
  %s11 = inlined_call_operand.<no memory space> [shape: f32[1,1], index: 11, kind: input, shape index: {}]
  %s12 = inlined_call_operand.hbm [shape: f32[1,8], index: 12, kind: output, shape index: {}]
  %s13 = sld [smem:[#allocation0]]
  $region86: #{model_forward.1} parent=0
    _
  %s15 = ssub.s32 1, %s13
  %s16 = scalar_select 0, %s15, %s13
  %v17 = vstv %s11
  %18 = vst [vmem:[#allocation5] sm:$0x1] %v17
  $region1: #{model_forward.1} parent=0
    #allocation6 [shape = 'u8[4096]{0}', space=smem, size = 0x1000, scoped, tag = 'input window, operand 0, single buffered']
    #allocation7 [shape = 's32[1]{0}', space=sflag, size = 0x4, scoped, tag = 'scoped memory for model_forward.1']
    #allocation8 [shape = 's32[1]{0}', space=sflag, size = 0x4, scoped, tag = 'scoped memory for model_forward.1']
    #allocation9 [shape = 's32[1]{0}', space=sflag, size = 0x4, scoped, tag = 'scoped memory for model_forward.1']
    #allocation10 [shape = 'u8[4096]{0}', space=vmem, size = 0x1000, scoped, tag = 'input window, operand 3, single buffered']
    #allocation11 [shape = 'u8[512]{0}', space=vmem, size = 0x400, scoped, tag = 'input window, operand 4, single buffered']
    #allocation12 [shape = 's32[1]{0}', space=sflag, size = 0x4, scoped, tag = 'scoped memory for model_forward.1']
    #allocation13 [shape = 'u8[512]{0}', space=vmem, size = 0x400, scoped, tag = 'input window, operand 6, single buffered']
    #allocation14 [shape = 'u8[16384]{0}', space=vmem, size = 0x4000, scoped, tag = 'input window, operand 7, single buffered']
    #allocation15 [shape = 's32[1]{0}', space=sflag, size = 0x4, scoped, tag = 'scoped memory for model_forward.1']
    #allocation16 [shape = 'u8[16384]{0}', space=vmem, size = 0x4000, scoped, tag = 'input window, operand 8, single buffered']
    #allocation17 [shape = 'u8[512]{0}', space=vmem, size = 0x400, scoped, tag = 'input window, operand 9, single buffered']
    #allocation18 [shape = 's32[1]{0}', space=sflag, size = 0x4, scoped, tag = 'scoped memory for model_forward.1']
    #allocation19 [shape = 'u8[512]{0}', space=vmem, size = 0x400, scoped, tag = 'output window, operand 0, single buffered']
    %19 = vsyncpa [#allocation9], 0
    %20 = vsyncpa [#allocation7], 0
    %21 = vsyncpa [#allocation12], 0
    %22 = vsyncpa [#allocation15], 0
    %23 = vsyncpa [#allocation18], 0
    %24 = vsyncpa [#allocation8], 0
    // Predicated region
    $region2: #{model_forward.1} parent=1 // pred_check
      _
    $region3: #{model_forward.1} parent=1 // pred_check_branch
      %26 = sbr.rel (0) target = $region5
    $region4: #{model_forward.1} parent=1 // pred_region
      %s28 = ssub.s32 128, 128
      %29 = vsyncadd [#allocation9], %s28
      %s31 = sshll.u32 %s0, 4
      %s32 = int_to_ptr.vmem [resolvable:$true] %s31
      %34 = dma.vmem_to_smem %s32, 128, [#allocation6], [#allocation9]
    $region5: #{model_forward.1} parent=1 // pred_fallthru
      _
    // Predicated region
    $region6: #{model_forward.1} parent=1 // pred_check
      _
    $region7: #{model_forward.1} parent=1 // pred_check_branch
      %36 = sbr.rel (0) target = $region9
    $region8: #{model_forward.1} parent=1 // pred_region
      _
    $region9: #{model_forward.1} parent=1 // pred_fallthru
      _
    // Predicated region
    $region10: #{model_forward.1} parent=1 // pred_check
      _
    $region11: #{model_forward.1} parent=1 // pred_check_branch
      %38 = sbr.rel (0) target = $region13
    $region12: #{model_forward.1} parent=1 // pred_region
      _
    $region13: #{model_forward.1} parent=1 // pred_fallthru
      _
    // Predicated region
    $region14: #{model_forward.1} parent=1 // pred_check
      _
    $region15: #{model_forward.1} parent=1 // pred_check_branch
      %40 = sbr.rel (0) target = $region17
    $region16: #{model_forward.1} parent=1 // pred_region
      %s42 = ssub.s32 128, 128
      %43 = vsyncadd [#allocation7], %s42
      %s45 = sshll.u32 [#allocation10], 4
      %s46 = int_to_ptr.vmem [resolvable:$true] %s45
      %48 = dma.hbm_to_vmem [thread:$0]  %s3, 128, %s46, [#allocation7]
    $region17: #{model_forward.1} parent=1 // pred_fallthru
      _
    // Predicated region
    $region18: #{model_forward.1} parent=1 // pred_check
      _
    $region19: #{model_forward.1} parent=1 // pred_check_branch
      %50 = sbr.rel (0) target = $region21
    $region20: #{model_forward.1} parent=1 // pred_region
      %s52 = ssub.s32 16, 16
      %53 = vsyncadd [#allocation12], %s52
      %s55 = sshll.u32 [#allocation11], 4
      %s56 = int_to_ptr.vmem [resolvable:$true] %s55
      %58 = dma.hbm_to_vmem [thread:$0]  %s4, 16, %s56, [#allocation12]
    $region21: #{model_forward.1} parent=1 // pred_fallthru
      _
    // Predicated region
    $region22: #{model_forward.1} parent=1 // pred_check
      _
    $region23: #{model_forward.1} parent=1 // pred_check_branch
      %60 = sbr.rel (0) target = $region25
    $region24: #{model_forward.1} parent=1 // pred_region
      _
    $region25: #{model_forward.1} parent=1 // pred_fallthru
      _
    // Predicated region
    $region26: #{model_forward.1} parent=1 // pred_check
      _
    $region27: #{model_forward.1} parent=1 // pred_check_branch
      %62 = sbr.rel (0) target = $region29
    $region28: #{model_forward.1} parent=1 // pred_region
      %s64 = ssub.s32 16, 16
      %65 = vsyncadd [#allocation12], %s64
      %s67 = sshll.u32 [#allocation13], 4
      %s68 = int_to_ptr.vmem [resolvable:$true] %s67
      %70 = dma.hbm_to_vmem [thread:$0]  %s6, 16, %s68, [#allocation12]
    $region29: #{model_forward.1} parent=1 // pred_fallthru
      _
    // Predicated region
    $region30: #{model_forward.1} parent=1 // pred_check
      _
    $region31: #{model_forward.1} parent=1 // pred_check_branch
      %72 = sbr.rel (0) target = $region33
    $region32: #{model_forward.1} parent=1 // pred_region
      %s74 = ssub.s32 512, 512
      %75 = vsyncadd [#allocation15], %s74
      %s76 = sshll.u32 [#allocation14], 4
      %s77 = int_to_ptr.vmem [resolvable:$true] %s76
      %82 = dma.hbm_to_vmem [thread:$0]  %s7, 512, %s77, [#allocation15], 128, 128, 8
    $region33: #{model_forward.1} parent=1 // pred_fallthru
      _
    // Predicated region
    $region34: #{model_forward.1} parent=1 // pred_check
      _
    $region35: #{model_forward.1} parent=1 // pred_check_branch
      %84 = sbr.rel (0) target = $region37
    $region36: #{model_forward.1} parent=1 // pred_region
      %s86 = ssub.s32 512, 512
      %87 = vsyncadd [#allocation15], %s86
      %s88 = sshll.u32 [#allocation16], 4
      %s89 = int_to_ptr.vmem [resolvable:$true] %s88
      %94 = dma.hbm_to_vmem [thread:$0]  %s8, 512, %s89, [#allocation15], 128, 128, 8
    $region37: #{model_forward.1} parent=1 // pred_fallthru
      _
    // Predicated region
    $region38: #{model_forward.1} parent=1 // pred_check
      _
    $region39: #{model_forward.1} parent=1 // pred_check_branch
      %96 = sbr.rel (0) target = $region41
    $region40: #{model_forward.1} parent=1 // pred_region
      %s98 = ssub.s32 16, 16
      %99 = vsyncadd [#allocation18], %s98
      %s101 = sshll.u32 [#allocation17], 4
      %s102 = int_to_ptr.vmem [resolvable:$true] %s101
      %104 = dma.hbm_to_vmem [thread:$0]  %s9, 16, %s102, [#allocation18]
    $region41: #{model_forward.1} parent=1 // pred_fallthru
      _
    // Predicated region
    $region42: #{model_forward.1} parent=1 // pred_check
      _
    $region43: #{model_forward.1} parent=1 // pred_check_branch
      %106 = sbr.rel (0) target = $region45
    $region44: #{model_forward.1} parent=1 // pred_region
      _
    $region45: #{model_forward.1} parent=1 // pred_fallthru
      _
    // Predicated region
    $region46: #{model_forward.1} parent=1 // pred_check
      _
    $region47: #{model_forward.1} parent=1 // pred_check_branch
      %108 = sbr.rel (0) target = $region49
    $region48: #{model_forward.1} parent=1 // pred_region
      _
    $region49: #{model_forward.1} parent=1 // pred_fallthru
      _
    // Predicated region
    $region50: #{model_forward.1} parent=1 // pred_check
      _
    $region51: #{model_forward.1} parent=1 // pred_check_branch
      %110 = sbr.rel (0) target = $region53
    $region52: #{model_forward.1} parent=1 // pred_region
      %111 = dma.done [#allocation9], 128
    $region53: #{model_forward.1} parent=1 // pred_fallthru
      _
    // Predicated region
    $region54: #{model_forward.1} parent=1 // pred_check
      _
    $region55: #{model_forward.1} parent=1 // pred_check_branch
      %113 = sbr.rel (0) target = $region57
    $region56: #{model_forward.1} parent=1 // pred_region
      %114 = dma.done [#allocation7], 128
    $region57: #{model_forward.1} parent=1 // pred_fallthru
      _
    // Predicated region
    $region58: #{model_forward.1} parent=1 // pred_check
      _
    $region59: #{model_forward.1} parent=1 // pred_check_branch
      %116 = sbr.rel (0) target = $region61
    $region60: #{model_forward.1} parent=1 // pred_region
      %117 = dma.done [#allocation12], 16
    $region61: #{model_forward.1} parent=1 // pred_fallthru
      _
    // Predicated region
    $region62: #{model_forward.1} parent=1 // pred_check
      _
    $region63: #{model_forward.1} parent=1 // pred_check_branch
      %119 = sbr.rel (0) target = $region65
    $region64: #{model_forward.1} parent=1 // pred_region
      %120 = dma.done [#allocation12], 16
    $region65: #{model_forward.1} parent=1 // pred_fallthru
      _
    // Predicated region
    $region66: #{model_forward.1} parent=1 // pred_check
      _
    $region67: #{model_forward.1} parent=1 // pred_check_branch
      %122 = sbr.rel (0) target = $region69
    $region68: #{model_forward.1} parent=1 // pred_region
      %123 = dma.done [#allocation15], 512
    $region69: #{model_forward.1} parent=1 // pred_fallthru
      _
    // Predicated region
    $region70: #{model_forward.1} parent=1 // pred_check
      _
    $region71: #{model_forward.1} parent=1 // pred_check_branch
      %125 = sbr.rel (0) target = $region73
    $region72: #{model_forward.1} parent=1 // pred_region
      %126 = dma.done [#allocation15], 512
    $region73: #{model_forward.1} parent=1 // pred_fallthru
      _
    // Predicated region
    $region74: #{model_forward.1} parent=1 // pred_check
      _
    $region75: #{model_forward.1} parent=1 // pred_check_branch
      %128 = sbr.rel (0) target = $region77
    $region76: #{model_forward.1} parent=1 // pred_region
      %129 = dma.done [#allocation18], 16
    $region77: #{model_forward.1} parent=1 // pred_fallthru
      _
    %130 = sfence
    %v131 = vld [vmem:[%s1] sm:$0xff]
    %v132 = vld [vmem:[%s1 + $0x8] sm:$0xff]
    %v133 = vld [vmem:[%s2] sm:$0xff]
    %v134 = vld [vmem:[%s2 + $0x8] sm:$0xff]
    %v135 = vld [vmem:[#allocation10] sm:$0xff]
    %vm136 = vcmask 64512
    %v138 = vsel %vm136, %v133, 0
    %v141 = vsel %vm136, %v134, 0
    %143 = vmatprep.subr.mxu0 0.0
    %144 = vmatpush1.msra.mxu0 %v135
    %145 = vmatprep.subr.mxu0 0.0
    %146 = vmatpush1.msra.mxu0 0.0
    %147 = vmatprep.subr.mxu0 0.0
    %148 = vmatpush1.msra.mxu0 0.0
    %149 = vmatprep.subr.mxu0 0.0
    %150 = vmatpush1.msra.mxu0 0.0
    %151 = vmatprep.subr.mxu0 0.0
    %152 = vmatpush1.msra.mxu0 0.0
    %153 = vmatprep.subr.mxu0 0.0
    %154 = vmatpush1.msra.mxu0 0.0
    %155 = vmatprep.subr.mxu0 0.0
    %156 = vmatpush1.msra.mxu0 0.0
    %157 = vmatprep.subr.mxu0 0.0
    %158 = vmatpush1.msra.mxu0 0.0
    %159 = vmatprep.subr.mxu0 0.0
    %160 = vmatpush1.msra.mxu0 0.0
    %161 = vmatprep.subr.mxu0 0.0
    %162 = vmatpush1.msra.mxu0 0.0
    %163 = vmatprep.subr.mxu0 0.0
    %164 = vmatpush1.msra.mxu0 0.0
    %165 = vmatprep.subr.mxu0 0.0
    %166 = vmatpush1.msra.mxu0 0.0
    %167 = vmatprep.subr.mxu0 0.0
    %168 = vmatpush1.msra.mxu0 0.0
    %169 = vmatprep.subr.mxu0 0.0
    %170 = vmatpush1.msra.mxu0 0.0
    %171 = vmatprep.subr.mxu0 0.0
    %172 = vmatpush1.msra.mxu0 0.0
    %173 = vmatprep.subr.mxu0 0.0
    %174 = vmatpush1.msra.mxu0 0.0
    %175 = vmatprep.subr.mxu0 0.0
    %176 = vmatpush1.msra.mxu0 0.0
    %177 = vmatprep.subr.mxu0 0.0
    %178 = vmatpush1.msra.mxu0 0.0
    %179 = vmatprep.subr.mxu0 0.0
    %180 = vmatpush1.msra.mxu0 0.0
    %181 = vmatprep.subr.mxu0 0.0
    %182 = vmatpush1.msra.mxu0 0.0
    %183 = vmatprep.subr.mxu0 0.0
    %184 = vmatpush1.msra.mxu0 0.0
    %185 = vmatprep.subr.mxu0 0.0
    %186 = vmatpush1.msra.mxu0 0.0
    %187 = vmatprep.subr.mxu0 0.0
    %188 = vmatpush1.msra.mxu0 0.0
    %189 = vmatprep.subr.mxu0 0.0
    %190 = vmatpush1.msra.mxu0 0.0
    %191 = vmatprep.subr.mxu0 0.0
    %192 = vmatpush1.msra.mxu0 0.0
    %193 = vmatprep.subr.mxu0 0.0
    %194 = vmatpush1.msra.mxu0 0.0
    %195 = vmatprep.subr.mxu0 0.0
    %196 = vmatpush1.msra.mxu0 0.0
    %197 = vmatprep.subr.mxu0 0.0
    %198 = vmatpush1.msra.mxu0 0.0
    %199 = vmatprep.subr.mxu0 0.0
    %200 = vmatpush1.msra.mxu0 0.0
    %201 = vmatprep.subr.mxu0 0.0
    %202 = vmatpush1.msra.mxu0 0.0
    %203 = vmatprep.subr.mxu0 0.0
    %204 = vmatpush1.msra.mxu0 0.0
    %205 = vmatprep.subr.mxu0 0.0
    %206 = vmatpush1.msra.mxu0 0.0
    %207 = vmatprep.mubr.f32.mxu0 0.0
    %208 = vmatmul.mubr.f32.gmra.mrb[0].mxu0 %v138
    %v209 = vpop.f32.mrb[0].mxu0
    %v210 = vadd.f32 0.0, %v209
    %v211 = vpop.f32.mrb[0].mxu0
    %212 = vmatprep.mubr.f32.mxu0 0.0
    %213 = vmatmul.mubr.f32.gmra.mrb[0].mxu0 %v141
    %v214 = vpop.f32.mrb[0].mxu0
    %v215 = vadd.f32 0.0, %v214
    %v216 = vpop.f32.mrb[0].mxu0
    %217 = vdwg.mxu0
    %v218 = vld [vmem:[#allocation11] sm:$0x1]
    %v220 = vlaneseq
    %v221 = vshrl.u32 %v220, 7
    %v222 = vsub.s32 0, %v221
    %v223 = vrot.slane %v218, %v222
    %vm225 = vcmask 130048
    %v227 = vsel %vm225, %v131, 0
    %v230 = vsel %vm225, %v132, 0
    %232 = vmatprep.subr.mxu0 0.0
    %233 = vmatpush1.msra.mxu0 %v210
    %234 = vmatprep.subr.mxu0 0.0
    %235 = vmatpush1.msra.mxu0 %v215
    %236 = vmatprep.subr.mxu0 0.0
    %237 = vmatpush1.msra.mxu0 0.0
    %238 = vmatprep.subr.mxu0 0.0
    %239 = vmatpush1.msra.mxu0 0.0
    %240 = vmatprep.subr.mxu0 0.0
    %241 = vmatpush1.msra.mxu0 0.0
    %242 = vmatprep.subr.mxu0 0.0
    %243 = vmatpush1.msra.mxu0 0.0
    %244 = vmatprep.subr.mxu0 0.0
    %245 = vmatpush1.msra.mxu0 0.0
    %246 = vmatprep.subr.mxu0 0.0
    %247 = vmatpush1.msra.mxu0 0.0
    %248 = vmatprep.subr.mxu0 0.0
    %249 = vmatpush1.msra.mxu0 0.0
    %250 = vmatprep.subr.mxu0 0.0
    %251 = vmatpush1.msra.mxu0 0.0
    %252 = vmatprep.subr.mxu0 0.0
    %253 = vmatpush1.msra.mxu0 0.0
    %254 = vmatprep.subr.mxu0 0.0
    %255 = vmatpush1.msra.mxu0 0.0
    %256 = vmatprep.subr.mxu0 0.0
    %257 = vmatpush1.msra.mxu0 0.0
    %258 = vmatprep.subr.mxu0 0.0
    %259 = vmatpush1.msra.mxu0 0.0
    %260 = vmatprep.subr.mxu0 0.0
    %261 = vmatpush1.msra.mxu0 0.0
    %262 = vmatprep.subr.mxu0 0.0
    %263 = vmatpush1.msra.mxu0 0.0
    %264 = vmatprep.subr.mxu0 0.0
    %265 = vmatpush1.msra.mxu0 0.0
    %266 = vmatprep.subr.mxu0 0.0
    %267 = vmatpush1.msra.mxu0 0.0
    %268 = vmatprep.subr.mxu0 0.0
    %269 = vmatpush1.msra.mxu0 0.0
    %270 = vmatprep.subr.mxu0 0.0
    %271 = vmatpush1.msra.mxu0 0.0
    %272 = vmatprep.subr.mxu0 0.0
    %273 = vmatpush1.msra.mxu0 0.0
    %274 = vmatprep.subr.mxu0 0.0
    %275 = vmatpush1.msra.mxu0 0.0
    %276 = vmatprep.subr.mxu0 0.0
    %277 = vmatpush1.msra.mxu0 0.0
    %278 = vmatprep.subr.mxu0 0.0
    %279 = vmatpush1.msra.mxu0 0.0
    %280 = vmatprep.subr.mxu0 0.0
    %281 = vmatpush1.msra.mxu0 0.0
    %282 = vmatprep.subr.mxu0 0.0
    %283 = vmatpush1.msra.mxu0 0.0
    %284 = vmatprep.subr.mxu0 0.0
    %285 = vmatpush1.msra.mxu0 0.0
    %286 = vmatprep.subr.mxu0 0.0
    %287 = vmatpush1.msra.mxu0 0.0
    %288 = vmatprep.subr.mxu0 0.0
    %289 = vmatpush1.msra.mxu0 0.0
    %290 = vmatprep.subr.mxu0 0.0
    %291 = vmatpush1.msra.mxu0 0.0
    %292 = vmatprep.subr.mxu0 0.0
    %293 = vmatpush1.msra.mxu0 0.0
    %294 = vmatprep.subr.mxu0 0.0
    %295 = vmatpush1.msra.mxu0 0.0
    %296 = vmatprep.mubr.f32.mxu0 0.0
    %297 = vmatmul.mubr.f32.gmra.mrb[0].mxu0 %v227
    %v298 = vpop.f32.mrb[0].mxu0
    %v299 = vadd.f32 %v223, %v298
    %v300 = vpop.f32.mrb[0].mxu0
    %301 = vmatprep.mubr.f32.mxu0 0.0
    %302 = vmatmul.mubr.f32.gmra.mrb[0].mxu0 %v230
    %v303 = vpop.f32.mrb[0].mxu0
    %v304 = vadd.f32 %v223, %v303
    %v305 = vpop.f32.mrb[0].mxu0
    %306 = vdwg.mxu0
    %v307 = vmax.f32 %v299, 0.0
    %v308 = vmax.f32 %v304, 0.0
    %v309 = vld [vmem:[%s5] sm:$0xff]
    %v310 = vld [vmem:[%s5 + $0x8] sm:$0xff]
    %v311 = vld [vmem:[%s5 + $0x10] sm:$0xff]
    %v312 = vld [vmem:[%s5 + $0x18] sm:$0xff]
    %vm313 = vcmask 261120
    %v315 = vsel %vm313, %v307, 0
    %v318 = vsel %vm313, %v308, 0
    %320 = vmatprep.subr.mxu0 0.0
    %321 = vmatpush1.msra.mxu0 %v309
    %322 = vmatprep.subr.mxu0 0.0
    %323 = vmatpush1.msra.mxu0 %v310
    %324 = vmatprep.subr.mxu0 0.0
    %325 = vmatpush1.msra.mxu0 %v311
    %326 = vmatprep.subr.mxu0 0.0
    %327 = vmatpush1.msra.mxu0 %v312
    %328 = vmatprep.subr.mxu0 0.0
    %329 = vmatpush1.msra.mxu0 0.0
    %330 = vmatprep.subr.mxu0 0.0
    %331 = vmatpush1.msra.mxu0 0.0
    %332 = vmatprep.subr.mxu0 0.0
    %333 = vmatpush1.msra.mxu0 0.0
    %334 = vmatprep.subr.mxu0 0.0
    %335 = vmatpush1.msra.mxu0 0.0
    %336 = vmatprep.subr.mxu0 0.0
    %337 = vmatpush1.msra.mxu0 0.0
    %338 = vmatprep.subr.mxu0 0.0
    %339 = vmatpush1.msra.mxu0 0.0
    %340 = vmatprep.subr.mxu0 0.0
    %341 = vmatpush1.msra.mxu0 0.0
    %342 = vmatprep.subr.mxu0 0.0
    %343 = vmatpush1.msra.mxu0 0.0
    %344 = vmatprep.subr.mxu0 0.0
    %345 = vmatpush1.msra.mxu0 0.0
    %346 = vmatprep.subr.mxu0 0.0
    %347 = vmatpush1.msra.mxu0 0.0
    %348 = vmatprep.subr.mxu0 0.0
    %349 = vmatpush1.msra.mxu0 0.0
    %350 = vmatprep.subr.mxu0 0.0
    %351 = vmatpush1.msra.mxu0 0.0
    %352 = vmatprep.subr.mxu0 0.0
    %353 = vmatpush1.msra.mxu0 0.0
    %354 = vmatprep.subr.mxu0 0.0
    %355 = vmatpush1.msra.mxu0 0.0
    %356 = vmatprep.subr.mxu0 0.0
    %357 = vmatpush1.msra.mxu0 0.0
    %358 = vmatprep.subr.mxu0 0.0
    %359 = vmatpush1.msra.mxu0 0.0
    %360 = vmatprep.subr.mxu0 0.0
    %361 = vmatpush1.msra.mxu0 0.0
    %362 = vmatprep.subr.mxu0 0.0
    %363 = vmatpush1.msra.mxu0 0.0
    %364 = vmatprep.subr.mxu0 0.0
    %365 = vmatpush1.msra.mxu0 0.0
    %366 = vmatprep.subr.mxu0 0.0
    %367 = vmatpush1.msra.mxu0 0.0
    %368 = vmatprep.subr.mxu0 0.0
    %369 = vmatpush1.msra.mxu0 0.0
    %370 = vmatprep.subr.mxu0 0.0
    %371 = vmatpush1.msra.mxu0 0.0
    %372 = vmatprep.subr.mxu0 0.0
    %373 = vmatpush1.msra.mxu0 0.0
    %374 = vmatprep.subr.mxu0 0.0
    %375 = vmatpush1.msra.mxu0 0.0
    %376 = vmatprep.subr.mxu0 0.0
    %377 = vmatpush1.msra.mxu0 0.0
    %378 = vmatprep.subr.mxu0 0.0
    %379 = vmatpush1.msra.mxu0 0.0
    %380 = vmatprep.subr.mxu0 0.0
    %381 = vmatpush1.msra.mxu0 0.0
    %382 = vmatprep.subr.mxu0 0.0
    %383 = vmatpush1.msra.mxu0 0.0
    %384 = vmatprep.mubr.f32.mxu0 0.0
    %385 = vmatmul.mubr.f32.gmra.mrb[0].mxu0 %v315
    %v386 = vpop.f32.mrb[0].mxu0
    %v387 = vadd.f32 0.0, %v386
    %v388 = vpop.f32.mrb[0].mxu0
    %389 = vmatprep.mubr.f32.mxu0 0.0
    %390 = vmatmul.mubr.f32.gmra.mrb[0].mxu0 %v318
    %v391 = vpop.f32.mrb[0].mxu0
    %v392 = vadd.f32 0.0, %v391
    %v393 = vpop.f32.mrb[0].mxu0
    %394 = vdwg.mxu0
    %v395 = vld [vmem:[#allocation13] sm:$0x1]
    %v397 = vlaneseq
    %v398 = vshrl.u32 %v397, 7
    %v399 = vsub.s32 0, %v398
    %v400 = vrot.slane %v395, %v399
    %402 = vmatprep.subr.mxu0 0.0
    %403 = vmatpush1.msra.mxu0 %v387
    %404 = vmatprep.subr.mxu0 0.0
    %405 = vmatpush1.msra.mxu0 %v392
    %406 = vmatprep.subr.mxu0 0.0
    %407 = vmatpush1.msra.mxu0 0.0
    %408 = vmatprep.subr.mxu0 0.0
    %409 = vmatpush1.msra.mxu0 0.0
    %410 = vmatprep.subr.mxu0 0.0
    %411 = vmatpush1.msra.mxu0 0.0
    %412 = vmatprep.subr.mxu0 0.0
    %413 = vmatpush1.msra.mxu0 0.0
    %414 = vmatprep.subr.mxu0 0.0
    %415 = vmatpush1.msra.mxu0 0.0
    %416 = vmatprep.subr.mxu0 0.0
    %417 = vmatpush1.msra.mxu0 0.0
    %418 = vmatprep.subr.mxu0 0.0
    %419 = vmatpush1.msra.mxu0 0.0
    %420 = vmatprep.subr.mxu0 0.0
    %421 = vmatpush1.msra.mxu0 0.0
    %422 = vmatprep.subr.mxu0 0.0
    %423 = vmatpush1.msra.mxu0 0.0
    %424 = vmatprep.subr.mxu0 0.0
    %425 = vmatpush1.msra.mxu0 0.0
    %426 = vmatprep.subr.mxu0 0.0
    %427 = vmatpush1.msra.mxu0 0.0
    %428 = vmatprep.subr.mxu0 0.0
    %429 = vmatpush1.msra.mxu0 0.0
    %430 = vmatprep.subr.mxu0 0.0
    %431 = vmatpush1.msra.mxu0 0.0
    %432 = vmatprep.subr.mxu0 0.0
    %433 = vmatpush1.msra.mxu0 0.0
    %434 = vmatprep.subr.mxu0 0.0
    %435 = vmatpush1.msra.mxu0 0.0
    %436 = vmatprep.subr.mxu0 0.0
    %437 = vmatpush1.msra.mxu0 0.0
    %438 = vmatprep.subr.mxu0 0.0
    %439 = vmatpush1.msra.mxu0 0.0
    %440 = vmatprep.subr.mxu0 0.0
    %441 = vmatpush1.msra.mxu0 0.0
    %442 = vmatprep.subr.mxu0 0.0
    %443 = vmatpush1.msra.mxu0 0.0
    %444 = vmatprep.subr.mxu0 0.0
    %445 = vmatpush1.msra.mxu0 0.0
    %446 = vmatprep.subr.mxu0 0.0
    %447 = vmatpush1.msra.mxu0 0.0
    %448 = vmatprep.subr.mxu0 0.0
    %449 = vmatpush1.msra.mxu0 0.0
    %450 = vmatprep.subr.mxu0 0.0
    %451 = vmatpush1.msra.mxu0 0.0
    %452 = vmatprep.subr.mxu0 0.0
    %453 = vmatpush1.msra.mxu0 0.0
    %454 = vmatprep.subr.mxu0 0.0
    %455 = vmatpush1.msra.mxu0 0.0
    %456 = vmatprep.subr.mxu0 0.0
    %457 = vmatpush1.msra.mxu0 0.0
    %458 = vmatprep.subr.mxu0 0.0
    %459 = vmatpush1.msra.mxu0 0.0
    %460 = vmatprep.subr.mxu0 0.0
    %461 = vmatpush1.msra.mxu0 0.0
    %462 = vmatprep.subr.mxu0 0.0
    %463 = vmatpush1.msra.mxu0 0.0
    %464 = vmatprep.subr.mxu0 0.0
    %465 = vmatpush1.msra.mxu0 0.0
    %466 = vmatprep.mubr.f32.mxu0 0.0
    %467 = vmatmul.mubr.f32.gmra.mrb[0].mxu0 %v227
    %v468 = vpop.f32.mrb[0].mxu0
    %v469 = vadd.f32 %v400, %v468
    %v470 = vpop.f32.mrb[0].mxu0
    %471 = vmatprep.mubr.f32.mxu0 0.0
    %472 = vmatmul.mubr.f32.gmra.mrb[0].mxu0 %v230
    %v473 = vpop.f32.mrb[0].mxu0
    %v474 = vadd.f32 %v400, %v473
    %v475 = vpop.f32.mrb[0].mxu0
    %476 = vdwg.mxu0
    %v477 = vmax.f32 %v469, 0.0
    %v478 = vmax.f32 %v474, 0.0
    %479 = vst.msk [vmem:[#allocation2] sm:$0xff] %vm313, %v477
    %480 = vst.msk [vmem:[#allocation2 + $0x8] sm:$0xff] %vm313, %v478
    %s481 = sld [smem:[#allocation6]]
    %s482 = sld [smem:[#allocation6 + $0x1]]
    %s483 = scalar_lea.vmem [#allocation2], %s481
    %v484 = vld [vmem:[%s483] sm:$0x1]
    %vm485 = vcmask 253952
    %486 = vst.msk [vmem:[#allocation3] sm:$0x1] %vm485, %v484
    %s487 = scalar_lea.vmem [#allocation2], %s482
    %v488 = vld [vmem:[%s487] sm:$0x1]
    %489 = vst.msk [vmem:[#allocation4] sm:$0x1] %vm485, %v488
    %s490 = sld [smem:[#allocation6 + $0x80]]
    %s491 = sld [smem:[#allocation6 + $0x81]]
    %s492 = scalar_lea.vmem [#allocation2], %s490
    %v493 = vld [vmem:[%s492] sm:$0x1]
    %494 = vst.msk [vmem:[#allocation3 + $0x1] sm:$0x1] %vm485, %v493
    %s495 = scalar_lea.vmem [#allocation2], %s491
    %v496 = vld [vmem:[%s495] sm:$0x1]
    %497 = vst.msk [vmem:[#allocation4 + $0x1] sm:$0x1] %vm485, %v496
    %s498 = sld [smem:[#allocation6 + $0x100]]
    %s499 = sld [smem:[#allocation6 + $0x101]]
    %s500 = scalar_lea.vmem [#allocation2], %s498
    %v501 = vld [vmem:[%s500] sm:$0x1]
    %502 = vst.msk [vmem:[#allocation3 + $0x2] sm:$0x1] %vm485, %v501
    %s503 = scalar_lea.vmem [#allocation2], %s499
    %v504 = vld [vmem:[%s503] sm:$0x1]
    %505 = vst.msk [vmem:[#allocation4 + $0x2] sm:$0x1] %vm485, %v504
    %s506 = sld [smem:[#allocation6 + $0x180]]
    %s507 = sld [smem:[#allocation6 + $0x181]]
    %s508 = scalar_lea.vmem [#allocation2], %s506
    %v509 = vld [vmem:[%s508] sm:$0x1]
    %510 = vst.msk [vmem:[#allocation3 + $0x3] sm:$0x1] %vm485, %v509
    %s511 = scalar_lea.vmem [#allocation2], %s507
    %v512 = vld [vmem:[%s511] sm:$0x1]
    %513 = vst.msk [vmem:[#allocation4 + $0x3] sm:$0x1] %vm485, %v512
    %s514 = sld [smem:[#allocation6 + $0x200]]
    %s515 = sld [smem:[#allocation6 + $0x201]]
    %s516 = scalar_lea.vmem [#allocation2], %s514
    %v517 = vld [vmem:[%s516] sm:$0x1]
    %518 = vst.msk [vmem:[#allocation3 + $0x4] sm:$0x1] %vm485, %v517
    %s519 = scalar_lea.vmem [#allocation2], %s515
    %v520 = vld [vmem:[%s519] sm:$0x1]
    %521 = vst.msk [vmem:[#allocation4 + $0x4] sm:$0x1] %vm485, %v520
    %s522 = sld [smem:[#allocation6 + $0x280]]
    %s523 = sld [smem:[#allocation6 + $0x281]]
    %s524 = scalar_lea.vmem [#allocation2], %s522
    %v525 = vld [vmem:[%s524] sm:$0x1]
    %526 = vst.msk [vmem:[#allocation3 + $0x5] sm:$0x1] %vm485, %v525
    %s527 = scalar_lea.vmem [#allocation2], %s523
    %v528 = vld [vmem:[%s527] sm:$0x1]
    %529 = vst.msk [vmem:[#allocation4 + $0x5] sm:$0x1] %vm485, %v528
    %s530 = sld [smem:[#allocation6 + $0x300]]
    %s531 = sld [smem:[#allocation6 + $0x301]]
    %s532 = scalar_lea.vmem [#allocation2], %s530
    %v533 = vld [vmem:[%s532] sm:$0x1]
    %534 = vst.msk [vmem:[#allocation3 + $0x6] sm:$0x1] %vm485, %v533
    %s535 = scalar_lea.vmem [#allocation2], %s531
    %v536 = vld [vmem:[%s535] sm:$0x1]
    %537 = vst.msk [vmem:[#allocation4 + $0x6] sm:$0x1] %vm485, %v536
    %s538 = sld [smem:[#allocation6 + $0x380]]
    %s539 = sld [smem:[#allocation6 + $0x381]]
    %s540 = scalar_lea.vmem [#allocation2], %s538
    %v541 = vld [vmem:[%s540] sm:$0x1]
    %542 = vst.msk [vmem:[#allocation3 + $0x7] sm:$0x1] %vm485, %v541
    %s543 = scalar_lea.vmem [#allocation2], %s539
    %v544 = vld [vmem:[%s543] sm:$0x1]
    %545 = vst.msk [vmem:[#allocation4 + $0x7] sm:$0x1] %vm485, %v544
    %v546 = vld [vmem:[#allocation3] sm:$0xff]
    %v547 = vld [vmem:[#allocation14] sm:$0xff]
    %v548 = vld [vmem:[#allocation14 + $0x8] sm:$0xff]
    %v549 = vld [vmem:[#allocation14 + $0x10] sm:$0xff]
    %v550 = vld [vmem:[#allocation14 + $0x18] sm:$0xff]
    %v551 = vld [vmem:[#allocation4] sm:$0xff]
    %v552 = vld [vmem:[#allocation16] sm:$0xff]
    %v553 = vld [vmem:[#allocation16 + $0x8] sm:$0xff]
    %v554 = vld [vmem:[#allocation16 + $0x10] sm:$0xff]
    %v555 = vld [vmem:[#allocation16 + $0x18] sm:$0xff]
    %v557 = vsel %vm313, %v551, 0
    %559 = vmatprep.subr.mxu0 0.0
    %560 = vmatpush1.msra.mxu0 %v552
    %561 = vmatprep.subr.mxu0 0.0
    %562 = vmatpush1.msra.mxu0 %v553
    %563 = vmatprep.subr.mxu0 0.0
    %564 = vmatpush1.msra.mxu0 %v554
    %565 = vmatprep.subr.mxu0 0.0
    %566 = vmatpush1.msra.mxu0 %v555
    %567 = vmatprep.subr.mxu0 0.0
    %568 = vmatpush1.msra.mxu0 0.0
    %569 = vmatprep.subr.mxu0 0.0
    %570 = vmatpush1.msra.mxu0 0.0
    %571 = vmatprep.subr.mxu0 0.0
    %572 = vmatpush1.msra.mxu0 0.0
    %573 = vmatprep.subr.mxu0 0.0
    %574 = vmatpush1.msra.mxu0 0.0
    %575 = vmatprep.subr.mxu0 0.0
    %576 = vmatpush1.msra.mxu0 0.0
    %577 = vmatprep.subr.mxu0 0.0
    %578 = vmatpush1.msra.mxu0 0.0
    %579 = vmatprep.subr.mxu0 0.0
    %580 = vmatpush1.msra.mxu0 0.0
    %581 = vmatprep.subr.mxu0 0.0
    %582 = vmatpush1.msra.mxu0 0.0
    %583 = vmatprep.subr.mxu0 0.0
    %584 = vmatpush1.msra.mxu0 0.0
    %585 = vmatprep.subr.mxu0 0.0
    %586 = vmatpush1.msra.mxu0 0.0
    %587 = vmatprep.subr.mxu0 0.0
    %588 = vmatpush1.msra.mxu0 0.0
    %589 = vmatprep.subr.mxu0 0.0
    %590 = vmatpush1.msra.mxu0 0.0
    %591 = vmatprep.subr.mxu0 0.0
    %592 = vmatpush1.msra.mxu0 0.0
    %593 = vmatprep.subr.mxu0 0.0
    %594 = vmatpush1.msra.mxu0 0.0
    %595 = vmatprep.subr.mxu0 0.0
    %596 = vmatpush1.msra.mxu0 0.0
    %597 = vmatprep.subr.mxu0 0.0
    %598 = vmatpush1.msra.mxu0 0.0
    %599 = vmatprep.subr.mxu0 0.0
    %600 = vmatpush1.msra.mxu0 0.0
    %601 = vmatprep.subr.mxu0 0.0
    %602 = vmatpush1.msra.mxu0 0.0
    %603 = vmatprep.subr.mxu0 0.0
    %604 = vmatpush1.msra.mxu0 0.0
    %605 = vmatprep.subr.mxu0 0.0
    %606 = vmatpush1.msra.mxu0 0.0
    %607 = vmatprep.subr.mxu0 0.0
    %608 = vmatpush1.msra.mxu0 0.0
    %609 = vmatprep.subr.mxu0 0.0
    %610 = vmatpush1.msra.mxu0 0.0
    %611 = vmatprep.subr.mxu0 0.0
    %612 = vmatpush1.msra.mxu0 0.0
    %613 = vmatprep.subr.mxu0 0.0
    %614 = vmatpush1.msra.mxu0 0.0
    %615 = vmatprep.subr.mxu0 0.0
    %616 = vmatpush1.msra.mxu0 0.0
    %617 = vmatprep.subr.mxu0 0.0
    %618 = vmatpush1.msra.mxu0 0.0
    %619 = vmatprep.subr.mxu0 0.0
    %620 = vmatpush1.msra.mxu0 0.0
    %621 = vmatprep.subr.mxu0 0.0
    %622 = vmatpush1.msra.mxu0 0.0
    %623 = vmatprep.mubr.f32.mxu0 0.0
    %624 = vmatmul.mubr.f32.gmra.mrb[0].mxu0 %v557
    %v625 = vpop.f32.mrb[0].mxu0
    %v626 = vadd.f32 0.0, %v625
    %v627 = vpop.f32.mrb[0].mxu0
    %628 = vdwg.mxu0
    %v630 = vsel %vm313, %v546, 0
    %632 = vmatprep.subr.mxu0 0.0
    %633 = vmatpush1.msra.mxu0 %v547
    %634 = vmatprep.subr.mxu0 0.0
    %635 = vmatpush1.msra.mxu0 %v548
    %636 = vmatprep.subr.mxu0 0.0
    %637 = vmatpush1.msra.mxu0 %v549
    %638 = vmatprep.subr.mxu0 0.0
    %639 = vmatpush1.msra.mxu0 %v550
    %640 = vmatprep.subr.mxu0 0.0
    %641 = vmatpush1.msra.mxu0 0.0
    %642 = vmatprep.subr.mxu0 0.0
    %643 = vmatpush1.msra.mxu0 0.0
    %644 = vmatprep.subr.mxu0 0.0
    %645 = vmatpush1.msra.mxu0 0.0
    %646 = vmatprep.subr.mxu0 0.0
    %647 = vmatpush1.msra.mxu0 0.0
    %648 = vmatprep.subr.mxu0 0.0
    %649 = vmatpush1.msra.mxu0 0.0
    %650 = vmatprep.subr.mxu0 0.0
    %651 = vmatpush1.msra.mxu0 0.0
    %652 = vmatprep.subr.mxu0 0.0
    %653 = vmatpush1.msra.mxu0 0.0
    %654 = vmatprep.subr.mxu0 0.0
    %655 = vmatpush1.msra.mxu0 0.0
    %656 = vmatprep.subr.mxu0 0.0
    %657 = vmatpush1.msra.mxu0 0.0
    %658 = vmatprep.subr.mxu0 0.0
    %659 = vmatpush1.msra.mxu0 0.0
    %660 = vmatprep.subr.mxu0 0.0
    %661 = vmatpush1.msra.mxu0 0.0
    %662 = vmatprep.subr.mxu0 0.0
    %663 = vmatpush1.msra.mxu0 0.0
    %664 = vmatprep.subr.mxu0 0.0
    %665 = vmatpush1.msra.mxu0 0.0
    %666 = vmatprep.subr.mxu0 0.0
    %667 = vmatpush1.msra.mxu0 0.0
    %668 = vmatprep.subr.mxu0 0.0
    %669 = vmatpush1.msra.mxu0 0.0
    %670 = vmatprep.subr.mxu0 0.0
    %671 = vmatpush1.msra.mxu0 0.0
    %672 = vmatprep.subr.mxu0 0.0
    %673 = vmatpush1.msra.mxu0 0.0
    %674 = vmatprep.subr.mxu0 0.0
    %675 = vmatpush1.msra.mxu0 0.0
    %676 = vmatprep.subr.mxu0 0.0
    %677 = vmatpush1.msra.mxu0 0.0
    %678 = vmatprep.subr.mxu0 0.0
    %679 = vmatpush1.msra.mxu0 0.0
    %680 = vmatprep.subr.mxu0 0.0
    %681 = vmatpush1.msra.mxu0 0.0
    %682 = vmatprep.subr.mxu0 0.0
    %683 = vmatpush1.msra.mxu0 0.0
    %684 = vmatprep.subr.mxu0 0.0
    %685 = vmatpush1.msra.mxu0 0.0
    %686 = vmatprep.subr.mxu0 0.0
    %687 = vmatpush1.msra.mxu0 0.0
    %688 = vmatprep.subr.mxu0 0.0
    %689 = vmatpush1.msra.mxu0 0.0
    %690 = vmatprep.subr.mxu0 0.0
    %691 = vmatpush1.msra.mxu0 0.0
    %692 = vmatprep.subr.mxu0 0.0
    %693 = vmatpush1.msra.mxu0 0.0
    %694 = vmatprep.subr.mxu0 0.0
    %695 = vmatpush1.msra.mxu0 0.0
    %696 = vmatprep.mubr.f32.mxu0 0.0
    %697 = vmatmul.mubr.f32.gmra.mrb[0].mxu0 %v630
    %v698 = vpop.f32.mrb[0].mxu0
    %v699 = vadd.f32 %v626, %v698
    %v700 = vpop.f32.mrb[0].mxu0
    %701 = vdwg.mxu0
    %v702 = vld [vmem:[#allocation17] sm:$0x1]
    %v704 = vlaneseq
    %v705 = vshrl.u32 %v704, 7
    %v706 = vsub.s32 0, %v705
    %v707 = vrot.slane %v702, %v706
    %v709 = vadd.f32 %v699, %v707
    %v710 = vmax.f32 %v709, 0.0
    %v711 = vld [vmem:[%s10] sm:$0x1]
    %v713 = vlaneseq
    %v714 = vshrl.u32 %v713, 7
    %v715 = vsub.s32 0, %v714
    %v716 = vrot.slane %v711, %v715
    %v718 = vmul.f32 %v710, %v716
    %v719 = vsel %vm313, %v718, 0.0
    %720 = vadd.xlane.f32.xlu0 %v719
    %v721 = vpop.xlane.xlu0 %720
    %v722 = vld [vmem:[#allocation5] sm:$0x1]
    %724 = vset.pattern.permute.xlu0 0
    %725 = vperm.xlu0 %724, %v722
    %v726 = vpop.permute.xlu0 %725
    %v728 = vlaneseq
    %v729 = vshrl.u32 %v728, 7
    %v730 = vsub.s32 0, %v729
    %v731 = vrot.slane %v726, %v730
    %v732 = vadd.f32 %v721, %v731
    %v734 = vlaneseq
    %v735 = vand.u32 %v734, 127
    %v736 = vlaneseq
    %v737 = vshrl.u32 %v736, 7
    %v738 = vsub.s32 %v735, %v737
    %v739 = vrot.slane %v732, %v738
    %vm741 = vcmask 57344
    %742 = vst.msk [vmem:[#allocation19] sm:$0x1] %vm741, %v739
    // Predicated region
    $region78: #{model_forward.1} parent=1 // pred_check
      _
    $region79: #{model_forward.1} parent=1 // pred_check_branch
      %744 = sbr.rel (0) target = $region81
    $region80: #{model_forward.1} parent=1 // pred_region
      %s746 = ssub.s32 16, 16
      %747 = vsyncadd [#allocation8], %s746
      %s749 = sshll.u32 [#allocation19], 4
      %s750 = int_to_ptr.vmem [resolvable:$true] %s749
      %752 = dma.vmem_to_hbm [thread:$0]  %s750, 16, %s12, [#allocation8]
    $region81: #{model_forward.1} parent=1 // pred_fallthru
      _
    // Predicated region
    $region82: #{model_forward.1} parent=1 // pred_check
      _
    $region83: #{model_forward.1} parent=1 // pred_check_branch
      %754 = sbr.rel (0) target = $region85
    $region84: #{model_forward.1} parent=1 // pred_region
      %755 = dma.done [#allocation8], 16
    $region85: #{model_forward.1} parent=1 // pred_fallthru
      _
    %756 = vsyncpa [#allocation7], 1
    %757 = vsyncpa [#allocation12], 1
    %758 = vsyncpa [#allocation15], 1
    %759 = vsyncpa [#allocation18], 1
    %760 = vsyncpa [#allocation8], 1
    %761 = vsyncpa [#allocation9], 1

</llo_original>
